<compile_context>
chip_gen: v7x
topology: tpu7x:2x2x1
jax: 0.10.0
libtpu: 0.0.40
codegen_flags: <defaults>
</compile_context>

<pallas_src>
import math
from functools import partial, lru_cache

import numpy as np
import jax
import jax.numpy as jnp
from jax.experimental import pallas as pl
from jax.experimental.pallas import tpu as pltpu


@lru_cache(maxsize=None)
def _dft_mats(a, b):
    """Fused real 2-D DFT matrices (NumPy host constants, cached per (a, b)).

    Forward : S = (Pr + i*Pi) @ Xv            with Xv rows indexed by n = n1*b + n2
    Inverse : out = Qr @ Sr - Qi @ Si         (Hermitian doubling + 1/(a*b) folded in)
    Row/col spectral index k = k1*w + k2, k2 in [0, w).
    """
    w = b // 2 + 1
    k1 = np.arange(a)[:, None]
    n1 = np.arange(a)[None, :]
    k2 = np.arange(w)[:, None]
    n2 = np.arange(b)[None, :]

    tha = 2.0 * np.pi * k1 * n1 / a                       # (a, a)  rows k1, cols n1
    thb = 2.0 * np.pi * k2 * n2 / b                       # (w, b)  rows k2, cols n2
    theta_f = (tha[:, None, :, None] + thb[None, :, None, :]).reshape(a * w, a * b)
    Pr = np.cos(theta_f)
    Pi = -np.sin(theta_f)

    coef = np.full(w, 2.0)
    coef[0] = 1.0
    if b % 2 == 0:
        coef[w - 1] = 1.0                                  # Nyquist bin not doubled
    coef_full = np.tile(coef, a) / (a * b)                 # index k1*w + k2 -> coef[k2]/(ab)

    pha = 2.0 * np.pi * np.arange(a)[:, None] * np.arange(a)[None, :] / a   # (a, a) rows n1, cols k1
    phb = 2.0 * np.pi * np.arange(b)[:, None] * np.arange(w)[None, :] / b   # (b, w) rows n2, cols k2
    theta_i = (pha[:, None, :, None] + phb[None, :, None, :]).reshape(a * b, a * w)
    Qr = np.cos(theta_i) * coef_full[None, :]
    Qi = np.sin(theta_i) * coef_full[None, :]

    return (Pr.astype(np.float32), Pi.astype(np.float32),
            Qr.astype(np.float32), Qi.astype(np.float32))


def _pick_tb(B, max_tb=8):
    """Largest divisor of B <= max_tb, preferring a grid length >= 2 (megacore)."""
    divs = [t for t in range(1, min(max_tb, B) + 1) if B % t == 0]
    pref = [t for t in divs if B // t >= 2]
    return max(pref) if pref else max(divs)


def _global_filter_kernel(x_ref, pr_ref, pi_ref, qr_ref, qi_ref,
                          wr_ref, wi_ref, o_ref, *, TB):
    # Grid-invariant constants, loaded once per grid step.
    pr = pr_ref[...]            # (a*w, a*b) bf16
    pi = pi_ref[...]
    qr = qr_ref[...]            # (a*b, a*w) bf16
    qi = qi_ref[...]
    wr = wr_ref[...]            # (a*w, C)   f32
    wi = wi_ref[...]

    for t in range(TB):                                    # static unroll over the batch block
        xt = x_ref[t].astype(jnp.bfloat16)                 # (a*b, C), C in the lane dim
        # forward rfft2 (unnormalized) as one matmul pair
        sr = jnp.dot(pr, xt, preferred_element_type=jnp.float32)   # (a*w, C)
        si = jnp.dot(pi, xt, preferred_element_type=jnp.float32)
        # learned complex spectral filter (elementwise, f32 on the VPU)
        yr = (sr * wr - si * wi).astype(jnp.bfloat16)
        yi = (sr * wi + si * wr).astype(jnp.bfloat16)
        # inverse irfft2 (1/(a*b) + Hermitian doubling folded into Qr/Qi)
        out = (jnp.dot(qr, yr, preferred_element_type=jnp.float32)
               - jnp.dot(qi, yi, preferred_element_type=jnp.float32))   # (a*b, C)
        o_ref[t] = out.astype(o_ref.dtype)


def global_filter1(x, complex_weight, spatial_size=None):
    """x: (B, N, C) ; complex_weight: (h, w, C, 2) with h = a, w = b // 2 + 1."""
    B, N, C = x.shape
    if spatial_size is None:
        a = b = int(math.sqrt(N))
    else:
        a, b = spatial_size
    w = b // 2 + 1
    assert complex_weight.shape == (a, w, C, 2)

    Pr, Pi, Qr, Qi = _dft_mats(a, b)
    bf16 = jnp.bfloat16
    Pr = jnp.asarray(Pr, dtype=bf16)
    Pi = jnp.asarray(Pi, dtype=bf16)
    Qr = jnp.asarray(Qr, dtype=bf16)
    Qi = jnp.asarray(Qi, dtype=bf16)

    # weight (a, w, C, 2) -> (a*w, C) real / imag, row index k1*w + k2 (matches P/Q)
    Wr = complex_weight[..., 0].reshape(a * w, C).astype(jnp.float32)
    Wi = complex_weight[..., 1].reshape(a * w, C).astype(jnp.float32)

    x32 = x.astype(jnp.float32)            # natural (B, N, C) layout, no transposes

    TB = _pick_tb(B)
    grid = (B // TB,)

    kernel = partial(_global_filter_kernel, TB=TB)

    def const_spec(shape):
        return pl.BlockSpec(shape, lambda i: (0,) * len(shape))

    out = pl.pallas_call(
        kernel,
        out_shape=jax.ShapeDtypeStruct((B, N, C), jnp.float32),
        grid=grid,
        in_specs=[
            pl.BlockSpec((TB, N, C), lambda i: (i, 0, 0)),
            const_spec((a * w, a * b)), const_spec((a * w, a * b)),
            const_spec((a * b, a * w)), const_spec((a * b, a * w)),
            const_spec((a * w, C)), const_spec((a * w, C)),
        ],
        out_specs=pl.BlockSpec((TB, N, C), lambda i: (i, 0, 0)),
        compiler_params=pltpu.CompilerParams(
            dimension_semantics=("parallel",)),
    )(x32, Pr, Pi, Qr, Qi, Wr, Wi)

    return out


if __name__ == "__main__":
    key = jax.random.PRNGKey(0)
    kw, kx = jax.random.split(key)

    # Small shapes consistent with the module: a = b = 8 -> N = 64, w = b//2 + 1 = 5.
    B, a, b, C = 4, 8, 8, 4
    N = a * b
    h, w = a, b // 2 + 1

    complex_weight = jax.random.normal(kw, (h, w, C, 2), dtype=jnp.float32) * 0.02
    x = jax.random.normal(kx, (B, N, C), dtype=jnp.float32)

    out = global_filter1(x, complex_weight)
    out = jax.block_until_ready(out)
    assert out.shape == (B, N, C)

    # Reference mirroring the PyTorch forward (rfft2 / irfft2 with norm='ortho').
    xr = x.astype(jnp.float32).reshape(B, a, b, C)
    W = complex_weight[..., 0] + 1j * complex_weight[..., 1]
    Y = jnp.fft.rfft2(xr, axes=(1, 2), norm="ortho") * W
    ref = jnp.fft.irfft2(Y, s=(a, b), axes=(1, 2), norm="ortho").reshape(B, N, C)

    np.testing.assert_allclose(np.asarray(out), np.asarray(ref), atol=2e-3, rtol=2e-2)
    print("KERNEL_OK")
</pallas_src>

<mosaic_0001>
module attributes {stable_mosaic.version = 11 : i64} {
  func.func @_global_filter_kernel(%arg0: i32, %arg1: memref<2x64x4xf32, #tpu.memory_space<vmem>>, %arg2: memref<40x64xbf16, #tpu.memory_space<vmem>>, %arg3: memref<40x64xbf16, #tpu.memory_space<vmem>>, %arg4: memref<64x40xbf16, #tpu.memory_space<vmem>>, %arg5: memref<64x40xbf16, #tpu.memory_space<vmem>>, %arg6: memref<40x4xf32, #tpu.memory_space<vmem>>, %arg7: memref<40x4xf32, #tpu.memory_space<vmem>>, %arg8: memref<2x64x4xf32, #tpu.memory_space<vmem>>) attributes {dimension_semantics = [#tpu.dimension_semantics<parallel>], iteration_bounds = array<i64: 2>, scalar_prefetch = 0 : i64, scratch_operands = 0 : i64, tpu.core_type = #tpu.core_type<tc>, window_params = [{transform_indices = @transform_0, window_bounds = array<i64: 2, 64, 4>}, {pipeline_mode = #tpu.pipeline_mode<synchronous>, transform_indices = @transform_1, window_bounds = array<i64: 40, 64>}, {pipeline_mode = #tpu.pipeline_mode<synchronous>, transform_indices = @transform_2, window_bounds = array<i64: 40, 64>}, {pipeline_mode = #tpu.pipeline_mode<synchronous>, transform_indices = @transform_3, window_bounds = array<i64: 64, 40>}, {pipeline_mode = #tpu.pipeline_mode<synchronous>, transform_indices = @transform_4, window_bounds = array<i64: 64, 40>}, {pipeline_mode = #tpu.pipeline_mode<synchronous>, transform_indices = @transform_5, window_bounds = array<i64: 40, 4>}, {pipeline_mode = #tpu.pipeline_mode<synchronous>, transform_indices = @transform_6, window_bounds = array<i64: 40, 4>}, {transform_indices = @transform_7, window_bounds = array<i64: 2, 64, 4>}]} {
    %c0 = arith.constant 0 : index
    %c0_0 = arith.constant 0 : index
    %0 = vector.load %arg2[%c0, %c0_0] : memref<40x64xbf16, #tpu.memory_space<vmem>>, vector<40x64xbf16>
    %c0_1 = arith.constant 0 : index
    %c0_2 = arith.constant 0 : index
    %1 = vector.load %arg3[%c0_1, %c0_2] : memref<40x64xbf16, #tpu.memory_space<vmem>>, vector<40x64xbf16>
    %c0_3 = arith.constant 0 : index
    %c0_4 = arith.constant 0 : index
    %2 = vector.load %arg4[%c0_3, %c0_4] : memref<64x40xbf16, #tpu.memory_space<vmem>>, vector<64x40xbf16>
    %c0_5 = arith.constant 0 : index
    %c0_6 = arith.constant 0 : index
    %3 = vector.load %arg5[%c0_5, %c0_6] : memref<64x40xbf16, #tpu.memory_space<vmem>>, vector<64x40xbf16>
    %c0_7 = arith.constant 0 : index
    %c0_8 = arith.constant 0 : index
    %4 = vector.load %arg6[%c0_7, %c0_8] : memref<40x4xf32, #tpu.memory_space<vmem>>, vector<40x4xf32>
    %c0_9 = arith.constant 0 : index
    %c0_10 = arith.constant 0 : index
    %5 = vector.load %arg7[%c0_9, %c0_10] : memref<40x4xf32, #tpu.memory_space<vmem>>, vector<40x4xf32>
    %c0_11 = arith.constant 0 : index
    %c0_12 = arith.constant 0 : index
    %c0_13 = arith.constant 0 : index
    %6 = vector.load %arg1[%c0_11, %c0_12, %c0_13] : memref<2x64x4xf32, #tpu.memory_space<vmem>>, vector<1x64x4xf32>
    %7 = vector.shape_cast %6 : vector<1x64x4xf32> to vector<64x4xf32>
    %8 = arith.truncf %7 : vector<64x4xf32> to vector<64x4xbf16>
    %cst = arith.constant dense<0.000000e+00> : vector<40x4xf32>
    %9 = tpu.matmul %0, %8, %cst {dimension_numbers = #tpu.dot_dimension_numbers<[1], [0], [0], [1], [0, 0, 1, 1], [], []>} : vector<40x64xbf16>, vector<64x4xbf16>, vector<40x4xf32> -> vector<40x4xf32>
    %cst_14 = arith.constant dense<0.000000e+00> : vector<40x4xf32>
    %10 = tpu.matmul %1, %8, %cst_14 {dimension_numbers = #tpu.dot_dimension_numbers<[1], [0], [0], [1], [0, 0, 1, 1], [], []>} : vector<40x64xbf16>, vector<64x4xbf16>, vector<40x4xf32> -> vector<40x4xf32>
    %11 = arith.mulf %9, %4 : vector<40x4xf32>
    %12 = arith.mulf %10, %5 : vector<40x4xf32>
    %13 = arith.subf %11, %12 : vector<40x4xf32>
    %14 = arith.truncf %13 : vector<40x4xf32> to vector<40x4xbf16>
    %15 = arith.mulf %9, %5 : vector<40x4xf32>
    %16 = arith.mulf %10, %4 : vector<40x4xf32>
    %17 = arith.addf %15, %16 : vector<40x4xf32>
    %18 = arith.truncf %17 : vector<40x4xf32> to vector<40x4xbf16>
    %cst_15 = arith.constant dense<0.000000e+00> : vector<64x4xf32>
    %19 = tpu.matmul %2, %14, %cst_15 {dimension_numbers = #tpu.dot_dimension_numbers<[1], [0], [0], [1], [0, 0, 1, 1], [], []>} : vector<64x40xbf16>, vector<40x4xbf16>, vector<64x4xf32> -> vector<64x4xf32>
    %cst_16 = arith.constant dense<0.000000e+00> : vector<64x4xf32>
    %20 = tpu.matmul %3, %18, %cst_16 {dimension_numbers = #tpu.dot_dimension_numbers<[1], [0], [0], [1], [0, 0, 1, 1], [], []>} : vector<64x40xbf16>, vector<40x4xbf16>, vector<64x4xf32> -> vector<64x4xf32>
    %21 = arith.subf %19, %20 : vector<64x4xf32>
    %c0_17 = arith.constant 0 : index
    %c0_18 = arith.constant 0 : index
    %c0_19 = arith.constant 0 : index
    %22 = vector.load %arg8[%c0_17, %c0_18, %c0_19] : memref<2x64x4xf32, #tpu.memory_space<vmem>>, vector<1x64x4xf32>
    %23 = vector.shape_cast %22 : vector<1x64x4xf32> to vector<64x4xf32>
    %24 = vector.shape_cast %21 : vector<64x4xf32> to vector<1x64x4xf32>
    tpu.vector_store %arg8[%c0_17, %c0_18, %c0_19], %24 {strides = array<i32>} : memref<2x64x4xf32, #tpu.memory_space<vmem>>, vector<1x64x4xf32>,
    %c1 = arith.constant 1 : index
    %c0_20 = arith.constant 0 : index
    %c0_21 = arith.constant 0 : index
    %25 = vector.load %arg1[%c1, %c0_20, %c0_21] : memref<2x64x4xf32, #tpu.memory_space<vmem>>, vector<1x64x4xf32>
    %26 = vector.shape_cast %25 : vector<1x64x4xf32> to vector<64x4xf32>
    %27 = arith.truncf %26 : vector<64x4xf32> to vector<64x4xbf16>
    %cst_22 = arith.constant dense<0.000000e+00> : vector<40x4xf32>
    %28 = tpu.matmul %0, %27, %cst_22 {dimension_numbers = #tpu.dot_dimension_numbers<[1], [0], [0], [1], [0, 0, 1, 1], [], []>} : vector<40x64xbf16>, vector<64x4xbf16>, vector<40x4xf32> -> vector<40x4xf32>
    %cst_23 = arith.constant dense<0.000000e+00> : vector<40x4xf32>
    %29 = tpu.matmul %1, %27, %cst_23 {dimension_numbers = #tpu.dot_dimension_numbers<[1], [0], [0], [1], [0, 0, 1, 1], [], []>} : vector<40x64xbf16>, vector<64x4xbf16>, vector<40x4xf32> -> vector<40x4xf32>
    %30 = arith.mulf %28, %4 : vector<40x4xf32>
    %31 = arith.mulf %29, %5 : vector<40x4xf32>
    %32 = arith.subf %30, %31 : vector<40x4xf32>
    %33 = arith.truncf %32 : vector<40x4xf32> to vector<40x4xbf16>
    %34 = arith.mulf %28, %5 : vector<40x4xf32>
    %35 = arith.mulf %29, %4 : vector<40x4xf32>
    %36 = arith.addf %34, %35 : vector<40x4xf32>
    %37 = arith.truncf %36 : vector<40x4xf32> to vector<40x4xbf16>
    %cst_24 = arith.constant dense<0.000000e+00> : vector<64x4xf32>
    %38 = tpu.matmul %2, %33, %cst_24 {dimension_numbers = #tpu.dot_dimension_numbers<[1], [0], [0], [1], [0, 0, 1, 1], [], []>} : vector<64x40xbf16>, vector<40x4xbf16>, vector<64x4xf32> -> vector<64x4xf32>
    %cst_25 = arith.constant dense<0.000000e+00> : vector<64x4xf32>
    %39 = tpu.matmul %3, %37, %cst_25 {dimension_numbers = #tpu.dot_dimension_numbers<[1], [0], [0], [1], [0, 0, 1, 1], [], []>} : vector<64x40xbf16>, vector<40x4xbf16>, vector<64x4xf32> -> vector<64x4xf32>
    %40 = arith.subf %38, %39 : vector<64x4xf32>
    %c1_26 = arith.constant 1 : index
    %c0_27 = arith.constant 0 : index
    %c0_28 = arith.constant 0 : index
    %41 = vector.load %arg8[%c1_26, %c0_27, %c0_28] : memref<2x64x4xf32, #tpu.memory_space<vmem>>, vector<1x64x4xf32>
    %42 = vector.shape_cast %41 : vector<1x64x4xf32> to vector<64x4xf32>
    %43 = vector.shape_cast %40 : vector<64x4xf32> to vector<1x64x4xf32>
    tpu.vector_store %arg8[%c1_26, %c0_27, %c0_28], %43 {strides = array<i32>} : memref<2x64x4xf32, #tpu.memory_space<vmem>>, vector<1x64x4xf32>,
    return
  }
  func.func @transform_0(%arg0: i32) -> (i32, i32, i32) {
    %c0_i32 = arith.constant 0 : i32
    %c0_i32_0 = arith.constant 0 : i32
    %c0_i32_1 = arith.constant 0 : i32
    return %arg0, %c0_i32, %c0_i32_0 : i32, i32, i32
  }
  func.func @transform_1(%arg0: i32) -> (i32, i32) {
    %c0_i32 = arith.constant 0 : i32
    %c0_i32_0 = arith.constant 0 : i32
    %c0_i32_1 = arith.constant 0 : i32
    return %c0_i32, %c0_i32_0 : i32, i32
  }
  func.func @transform_2(%arg0: i32) -> (i32, i32) {
    %c0_i32 = arith.constant 0 : i32
    %c0_i32_0 = arith.constant 0 : i32
    %c0_i32_1 = arith.constant 0 : i32
    return %c0_i32, %c0_i32_0 : i32, i32
  }
  func.func @transform_3(%arg0: i32) -> (i32, i32) {
    %c0_i32 = arith.constant 0 : i32
    %c0_i32_0 = arith.constant 0 : i32
    %c0_i32_1 = arith.constant 0 : i32
    return %c0_i32, %c0_i32_0 : i32, i32
  }
  func.func @transform_4(%arg0: i32) -> (i32, i32) {
    %c0_i32 = arith.constant 0 : i32
    %c0_i32_0 = arith.constant 0 : i32
    %c0_i32_1 = arith.constant 0 : i32
    return %c0_i32, %c0_i32_0 : i32, i32
  }
  func.func @transform_5(%arg0: i32) -> (i32, i32) {
    %c0_i32 = arith.constant 0 : i32
    %c0_i32_0 = arith.constant 0 : i32
    %c0_i32_1 = arith.constant 0 : i32
    return %c0_i32, %c0_i32_0 : i32, i32
  }
  func.func @transform_6(%arg0: i32) -> (i32, i32) {
    %c0_i32 = arith.constant 0 : i32
    %c0_i32_0 = arith.constant 0 : i32
    %c0_i32_1 = arith.constant 0 : i32
    return %c0_i32, %c0_i32_0 : i32, i32
  }
  func.func @transform_7(%arg0: i32) -> (i32, i32, i32) {
    %c0_i32 = arith.constant 0 : i32
    %c0_i32_0 = arith.constant 0 : i32
    %c0_i32_1 = arith.constant 0 : i32
    return %arg0, %c0_i32, %c0_i32_0 : i32, i32, i32
  }
}

</mosaic_0001>

<llo_original>
// kernel: tpu_custom_call.1
$region0: #{tpu_custom_call.1}
  #allocation0 [shape = 'u32[]', space=smem, size = 0x4, offset = 0x4, fixed_abs, tag = 'smem constant byte address 0x4 - core index']
  #allocation1 [shape = 'u32[144,128]{1,0:T(1,128)}', space=vmem, size = 0x12000, scoped, tag = 'internal scratch']
  %s0 = inlined_call_operand.vmem [shape: f32[4,64,4], index: 0, kind: input, shape index: {}]
  %s1 = inlined_call_operand.vmem [shape: bf16[40,64], index: 1, kind: input, shape index: {}]
  %s2 = inlined_call_operand.vmem [shape: bf16[40,64], index: 2, kind: input, shape index: {}]
  %s3 = inlined_call_operand.vmem [shape: bf16[64,40], index: 3, kind: input, shape index: {}]
  %s4 = inlined_call_operand.vmem [shape: bf16[64,40], index: 4, kind: input, shape index: {}]
  %s5 = inlined_call_operand.vmem [shape: f32[40,4], index: 5, kind: input, shape index: {}]
  %s6 = inlined_call_operand.vmem [shape: f32[40,4], index: 6, kind: input, shape index: {}]
  %s7 = inlined_call_operand.vmem [shape: f32[4,64,4], index: 7, kind: output, shape index: {}]
  %s8 = sld [smem:[#allocation0]]
  $region61: #{tpu_custom_call.1} parent=0
    _
  %s10 = ssub.s32 1, %s8
  %s11 = scalar_select 0, %s10, %s8
  loop: start=0, step=1, limit=4
  $region2: #{tpu_custom_call.1} parent=0 // loop_pre_header
    _
  $region3: #{tpu_custom_call.1} parent=0 // loop_header
    %s13 = sphi 0, %s17
    %p14 = scmp.ge.s32.totalorder %s13, 4
    %s23 = sphi 0, %s25
    %s26 = sphi 0, %s23
    %s27 = sphi 0, %s26
    %s43 = sphi 0, %s27
    %s47 = sphi 0, %s47
    %s49 = sphi 0, %s47
    %s50 = sphi 0, %s49
    %s64 = sphi 0, %s50
    %s68 = sphi 0, %s68
    %s70 = sphi 0, %s68
    %s71 = sphi 0, %s70
    %s85 = sphi 0, %s71
    %s89 = sphi 0, %s89
    %s91 = sphi 0, %s89
    %s92 = sphi 0, %s91
    %s106 = sphi 0, %s92
    %s110 = sphi 0, %s110
    %s112 = sphi 0, %s110
    %s113 = sphi 0, %s112
    %s127 = sphi 0, %s113
    %s131 = sphi 0, %s131
    %s133 = sphi 0, %s131
    %s134 = sphi 0, %s133
    %s148 = sphi 0, %s134
    %s152 = sphi 0, %s152
    %s154 = sphi 0, %s152
    %s155 = sphi 0, %s154
    %s169 = sphi 0, %s155
    %s175 = sphi 0, %s177
    %s178 = sphi 0, %s175
    %s179 = sphi 0, %s178
    %s195 = sphi 0, %s179
  $region4: #{tpu_custom_call.1} parent=0 // loop_header_branch
    %16 = sbr.rel (%p14) target = $region8
  $region5: #{tpu_custom_call.1} parent=0 // loop_body
    %s18 = ssub.s32 %s13, 1
    %s19 = ssub.s32 %s13, 2
    %s20 = sadd.s32 %s13, 1
    %s21 = ssub.s32 %s13, %s20
    %p22 = scmp.eq.s32.totalorder %s21, 0
    %s24 = sadd.s32 %s23, 1
    %s25 = scalar_select %p22, %s23, %s24
    %p28 = pneg %p22
    %p29 = scmp.eq.s32.totalorder %s13, 1
    %p30 = por %p28, %p29
    %p31 = scmp.ne.s32.totalorder %s23, %s26
    %p32 = scmp.eq.s32.totalorder %s13, 0
    %p33 = por %p31, %p32
    %p34 = scmp.ne.s32.totalorder %s23, %s26
    %p35 = scmp.eq.s32.totalorder %s18, 1
    %p36 = por %p34, %p35
    %p37 = scmp.ne.s32.totalorder %s26, %s27
    %p38 = scmp.eq.s32.totalorder %s18, 0
    %p39 = por %p37, %p38
    %p40 = scmp.ne.s32.totalorder %s26, %s27
    %p41 = scmp.eq.s32.totalorder %s19, 1
    %p42 = por %p40, %p41
    %p44 = scmp.ne.s32.totalorder %s27, %s43
    %p45 = scmp.eq.s32.totalorder %s19, 0
    %p46 = por %p44, %p45
    %s48 = sadd.s32 %s47, 1
    %p51 = scmp.eq.s32.totalorder %s13, 1
    %p52 = scmp.ne.s32.totalorder %s47, %s49
    %p53 = scmp.eq.s32.totalorder %s13, 0
    %p54 = por %p52, %p53
    %p55 = scmp.ne.s32.totalorder %s47, %s49
    %p56 = scmp.eq.s32.totalorder %s18, 1
    %p57 = por %p55, %p56
    %p58 = scmp.ne.s32.totalorder %s49, %s50
    %p59 = scmp.eq.s32.totalorder %s18, 0
    %p60 = por %p58, %p59
    %p61 = scmp.ne.s32.totalorder %s49, %s50
    %p62 = scmp.eq.s32.totalorder %s19, 1
    %p63 = por %p61, %p62
    %p65 = scmp.ne.s32.totalorder %s50, %s64
    %p66 = scmp.eq.s32.totalorder %s19, 0
    %p67 = por %p65, %p66
    %s69 = sadd.s32 %s68, 1
    %p72 = scmp.eq.s32.totalorder %s13, 1
    %p73 = scmp.ne.s32.totalorder %s68, %s70
    %p74 = scmp.eq.s32.totalorder %s13, 0
    %p75 = por %p73, %p74
    %p76 = scmp.ne.s32.totalorder %s68, %s70
    %p77 = scmp.eq.s32.totalorder %s18, 1
    %p78 = por %p76, %p77
    %p79 = scmp.ne.s32.totalorder %s70, %s71
    %p80 = scmp.eq.s32.totalorder %s18, 0
    %p81 = por %p79, %p80
    %p82 = scmp.ne.s32.totalorder %s70, %s71
    %p83 = scmp.eq.s32.totalorder %s19, 1
    %p84 = por %p82, %p83
    %p86 = scmp.ne.s32.totalorder %s71, %s85
    %p87 = scmp.eq.s32.totalorder %s19, 0
    %p88 = por %p86, %p87
    %s90 = sadd.s32 %s89, 1
    %p93 = scmp.eq.s32.totalorder %s13, 1
    %p94 = scmp.ne.s32.totalorder %s89, %s91
    %p95 = scmp.eq.s32.totalorder %s13, 0
    %p96 = por %p94, %p95
    %p97 = scmp.ne.s32.totalorder %s89, %s91
    %p98 = scmp.eq.s32.totalorder %s18, 1
    %p99 = por %p97, %p98
    %p100 = scmp.ne.s32.totalorder %s91, %s92
    %p101 = scmp.eq.s32.totalorder %s18, 0
    %p102 = por %p100, %p101
    %p103 = scmp.ne.s32.totalorder %s91, %s92
    %p104 = scmp.eq.s32.totalorder %s19, 1
    %p105 = por %p103, %p104
    %p107 = scmp.ne.s32.totalorder %s92, %s106
    %p108 = scmp.eq.s32.totalorder %s19, 0
    %p109 = por %p107, %p108
    %s111 = sadd.s32 %s110, 1
    %p114 = scmp.eq.s32.totalorder %s13, 1
    %p115 = scmp.ne.s32.totalorder %s110, %s112
    %p116 = scmp.eq.s32.totalorder %s13, 0
    %p117 = por %p115, %p116
    %p118 = scmp.ne.s32.totalorder %s110, %s112
    %p119 = scmp.eq.s32.totalorder %s18, 1
    %p120 = por %p118, %p119
    %p121 = scmp.ne.s32.totalorder %s112, %s113
    %p122 = scmp.eq.s32.totalorder %s18, 0
    %p123 = por %p121, %p122
    %p124 = scmp.ne.s32.totalorder %s112, %s113
    %p125 = scmp.eq.s32.totalorder %s19, 1
    %p126 = por %p124, %p125
    %p128 = scmp.ne.s32.totalorder %s113, %s127
    %p129 = scmp.eq.s32.totalorder %s19, 0
    %p130 = por %p128, %p129
    %s132 = sadd.s32 %s131, 1
    %p135 = scmp.eq.s32.totalorder %s13, 1
    %p136 = scmp.ne.s32.totalorder %s131, %s133
    %p137 = scmp.eq.s32.totalorder %s13, 0
    %p138 = por %p136, %p137
    %p139 = scmp.ne.s32.totalorder %s131, %s133
    %p140 = scmp.eq.s32.totalorder %s18, 1
    %p141 = por %p139, %p140
    %p142 = scmp.ne.s32.totalorder %s133, %s134
    %p143 = scmp.eq.s32.totalorder %s18, 0
    %p144 = por %p142, %p143
    %p145 = scmp.ne.s32.totalorder %s133, %s134
    %p146 = scmp.eq.s32.totalorder %s19, 1
    %p147 = por %p145, %p146
    %p149 = scmp.ne.s32.totalorder %s134, %s148
    %p150 = scmp.eq.s32.totalorder %s19, 0
    %p151 = por %p149, %p150
    %s153 = sadd.s32 %s152, 1
    %p156 = scmp.eq.s32.totalorder %s13, 1
    %p157 = scmp.ne.s32.totalorder %s152, %s154
    %p158 = scmp.eq.s32.totalorder %s13, 0
    %p159 = por %p157, %p158
    %p160 = scmp.ne.s32.totalorder %s152, %s154
    %p161 = scmp.eq.s32.totalorder %s18, 1
    %p162 = por %p160, %p161
    %p163 = scmp.ne.s32.totalorder %s154, %s155
    %p164 = scmp.eq.s32.totalorder %s18, 0
    %p165 = por %p163, %p164
    %p166 = scmp.ne.s32.totalorder %s154, %s155
    %p167 = scmp.eq.s32.totalorder %s19, 1
    %p168 = por %p166, %p167
    %p170 = scmp.ne.s32.totalorder %s155, %s169
    %p171 = scmp.eq.s32.totalorder %s19, 0
    %p172 = por %p170, %p171
    %s173 = ssub.s32 %s13, %s20
    %p174 = scmp.eq.s32.totalorder %s173, 0
    %s176 = sadd.s32 %s175, 1
    %s177 = scalar_select %p174, %s175, %s176
    %p180 = pneg %p174
    %p181 = scmp.eq.s32.totalorder %s13, 1
    %p182 = por %p180, %p181
    %p183 = scmp.ne.s32.totalorder %s175, %s178
    %p184 = scmp.eq.s32.totalorder %s13, 0
    %p185 = por %p183, %p184
    %p186 = scmp.ne.s32.totalorder %s175, %s178
    %p187 = scmp.eq.s32.totalorder %s18, 1
    %p188 = por %p186, %p187
    %p189 = scmp.ne.s32.totalorder %s178, %s179
    %p190 = scmp.eq.s32.totalorder %s18, 0
    %p191 = por %p189, %p190
    %p192 = scmp.ne.s32.totalorder %s178, %s179
    %p193 = scmp.eq.s32.totalorder %s19, 1
    %p194 = por %p192, %p193
    %p196 = scmp.ne.s32.totalorder %s179, %s195
    %p197 = scmp.eq.s32.totalorder %s19, 0
    %p198 = por %p196, %p197
    %p199 = scmp.le.s32.totalorder 1, %s13
    %p200 = scmp.lt.s32.totalorder %s13, 3
    %p201 = pnand %p199, %p200
    %p202 = pneg %p201
    // Predicated region
    $region9: #{tpu_custom_call.1} parent=5 // pred_check
      _
    $region10: #{tpu_custom_call.1} parent=5 // pred_check_branch
      %204 = sbr.rel (%p201) target = $region12
    $region11: #{tpu_custom_call.1} parent=5 // pred_region
      %s205 = ssub.s32 %s13, 1
      // Predicated region
      $region13: #{tpu_custom_call.1} parent=11 // pred_check
        %p206 = pneg %p60
      $region14: #{tpu_custom_call.1} parent=11 // pred_check_branch
        %208 = sbr.rel (%p206) target = $region16
      $region15: #{tpu_custom_call.1} parent=11 // pred_region
        _
      $region16: #{tpu_custom_call.1} parent=11 // pred_fallthru
        _
      // Predicated region
      $region17: #{tpu_custom_call.1} parent=11 // pred_check
        %p209 = pneg %p81
      $region18: #{tpu_custom_call.1} parent=11 // pred_check_branch
        %211 = sbr.rel (%p209) target = $region20
      $region19: #{tpu_custom_call.1} parent=11 // pred_region
        _
      $region20: #{tpu_custom_call.1} parent=11 // pred_fallthru
        _
      // Predicated region
      $region21: #{tpu_custom_call.1} parent=11 // pred_check
        %p212 = pneg %p102
      $region22: #{tpu_custom_call.1} parent=11 // pred_check_branch
        %214 = sbr.rel (%p212) target = $region24
      $region23: #{tpu_custom_call.1} parent=11 // pred_region
        _
      $region24: #{tpu_custom_call.1} parent=11 // pred_fallthru
        _
      // Predicated region
      $region25: #{tpu_custom_call.1} parent=11 // pred_check
        %p215 = pneg %p123
      $region26: #{tpu_custom_call.1} parent=11 // pred_check_branch
        %217 = sbr.rel (%p215) target = $region28
      $region27: #{tpu_custom_call.1} parent=11 // pred_region
        _
      $region28: #{tpu_custom_call.1} parent=11 // pred_fallthru
        _
      // Predicated region
      $region29: #{tpu_custom_call.1} parent=11 // pred_check
        %p218 = pneg %p144
      $region30: #{tpu_custom_call.1} parent=11 // pred_check_branch
        %220 = sbr.rel (%p218) target = $region32
      $region31: #{tpu_custom_call.1} parent=11 // pred_region
        _
      $region32: #{tpu_custom_call.1} parent=11 // pred_fallthru
        _
      // Predicated region
      $region33: #{tpu_custom_call.1} parent=11 // pred_check
        %p221 = pneg %p165
      $region34: #{tpu_custom_call.1} parent=11 // pred_check_branch
        %223 = sbr.rel (%p221) target = $region36
      $region35: #{tpu_custom_call.1} parent=11 // pred_region
        _
      $region36: #{tpu_custom_call.1} parent=11 // pred_fallthru
        _
    $region12: #{tpu_custom_call.1} parent=5 // pred_fallthru
      _
    %p224 = scmp.lt.s32.totalorder %s13, 2
    // Predicated region
    $region37: #{tpu_custom_call.1} parent=5 // pred_check
      %p225 = pneg %p224
    $region38: #{tpu_custom_call.1} parent=5 // pred_check_branch
      %227 = sbr.rel (%p225) target = $region40
    $region39: #{tpu_custom_call.1} parent=5 // pred_region
      // Predicated region
      $region41: #{tpu_custom_call.1} parent=39 // pred_check
        %p228 = pneg %p33
      $region42: #{tpu_custom_call.1} parent=39 // pred_check_branch
        %230 = sbr.rel (%p228) target = $region44
      $region43: #{tpu_custom_call.1} parent=39 // pred_region
        %s231 = smul.u32 2, %s13
        %p232 = scmp.lt.s32.totalorder %s231, 3
        %s233 = scalar_select %p232, %s231, 3
        %s234 = smul.addr %s233, 8
        %s235 = smul.addr %s234, 8
        %s236 = scalar_lea.vmem %s0, %s235
        %s237 = smul.u32 2, %s13
      $region44: #{tpu_custom_call.1} parent=39 // pred_fallthru
        _
    $region40: #{tpu_custom_call.1} parent=5 // pred_fallthru
      _
    %p238 = scmp.le.s32.totalorder 1, %s13
    %p239 = scmp.lt.s32.totalorder %s13, 3
    %p240 = pnand %p238, %p239
    %p241 = pneg %p240
    // Predicated region
    $region45: #{tpu_custom_call.1} parent=5 // pred_check
      _
    $region46: #{tpu_custom_call.1} parent=5 // pred_check_branch
      %243 = sbr.rel (%p240) target = $region48
    $region47: #{tpu_custom_call.1} parent=5 // pred_region
      %s244 = ssub.s32 %s13, 1
      %s245 = smul.u32 2, %s18
      %p246 = scmp.lt.s32.totalorder %s245, 3
      %s247 = scalar_select %p246, %s245, 3
      %s248 = smul.addr %s247, 8
      %s249 = smul.addr %s248, 8
      %s250 = scalar_lea.vmem %s0, %s249
      %p251 = pneg %p39
      %p252 = pneg %p36
      %p253 = pneg %p60
      %p254 = pneg %p57
      %p255 = pneg %p81
      %p256 = pneg %p78
      %p257 = pneg %p102
      %p258 = pneg %p99
      %p259 = pneg %p123
      %p260 = pneg %p120
      %p261 = pneg %p144
      %p262 = pneg %p141
      %p263 = pneg %p165
      %p264 = pneg %p162
      %p265 = pneg %p191
      %p266 = pneg %p188
      %s267 = smul.u32 2, %s18
      %p268 = scmp.lt.s32.totalorder %s267, 3
      %s269 = scalar_select %p268, %s267, 3
      %s270 = smul.addr %s269, 8
      %s271 = smul.addr %s270, 8
      %s272 = scalar_lea.vmem %s7, %s271
      %s273 = smul.u32 2, %s18
      %p274 = scmp.lt.s32.totalorder %s273, 3
      %s275 = scalar_select %p274, %s273, 3
      %s276 = smul.addr %s275, 8
      %s277 = smul.addr %s276, 8
      %s278 = scalar_lea.vmem %s0, %s277
      %s279 = smul.u32 2, %s18
      %s280 = smul.u32 2, %s18
      %p281 = scmp.lt.s32.totalorder %s280, 3
      %s282 = scalar_select %p281, %s280, 3
      %s283 = smul.addr %s282, 8
      %s284 = smul.addr %s283, 8
      %s285 = scalar_lea.vmem %s7, %s284
      %s286 = smul.u32 2, %s18
      %v288 = vld [vmem:[%s1] sm:$0xf]
      %v289 = vld [vmem:[%s1 + $0x4] sm:$0xf]
      %v290 = vld [vmem:[%s1 + $0x8] sm:$0xf]
      %v291 = vld [vmem:[%s1 + $0xc] sm:$0xf]
      %v292 = vld [vmem:[%s1 + $0x10] sm:$0xf]
      %v293 = vld [vmem:[%s2] sm:$0xf]
      %v294 = vld [vmem:[%s2 + $0x4] sm:$0xf]
      %v295 = vld [vmem:[%s2 + $0x8] sm:$0xf]
      %v296 = vld [vmem:[%s2 + $0xc] sm:$0xf]
      %v297 = vld [vmem:[%s2 + $0x10] sm:$0xf]
      %v298 = vld [vmem:[%s3] sm:$0xf]
      %v299 = vld [vmem:[%s3 + $0x4] sm:$0xf]
      %v300 = vld [vmem:[%s3 + $0x8] sm:$0xf]
      %v301 = vld [vmem:[%s3 + $0xc] sm:$0xf]
      %v302 = vld [vmem:[%s3 + $0x10] sm:$0xf]
      %v303 = vld [vmem:[%s3 + $0x14] sm:$0xf]
      %v304 = vld [vmem:[%s3 + $0x18] sm:$0xf]
      %v305 = vld [vmem:[%s3 + $0x1c] sm:$0xf]
      %v306 = vld [vmem:[%s4] sm:$0xf]
      %v307 = vld [vmem:[%s4 + $0x4] sm:$0xf]
      %v308 = vld [vmem:[%s4 + $0x8] sm:$0xf]
      %v309 = vld [vmem:[%s4 + $0xc] sm:$0xf]
      %v310 = vld [vmem:[%s4 + $0x10] sm:$0xf]
      %v311 = vld [vmem:[%s4 + $0x14] sm:$0xf]
      %v312 = vld [vmem:[%s4 + $0x18] sm:$0xf]
      %v313 = vld [vmem:[%s4 + $0x1c] sm:$0xf]
      %v314 = vld [vmem:[%s5] sm:$0xff]
      %v315 = vld [vmem:[%s5 + $0x8] sm:$0xff]
      %v316 = vld [vmem:[%s5 + $0x10] sm:$0xff]
      %v317 = vld [vmem:[%s5 + $0x18] sm:$0xff]
      %v318 = vld [vmem:[%s5 + $0x20] sm:$0xff]
      %v319 = vld [vmem:[%s6] sm:$0xff]
      %v320 = vld [vmem:[%s6 + $0x8] sm:$0xff]
      %v321 = vld [vmem:[%s6 + $0x10] sm:$0xff]
      %v322 = vld [vmem:[%s6 + $0x18] sm:$0xff]
      %v323 = vld [vmem:[%s6 + $0x20] sm:$0xff]
      %v324 = vld [vmem:[%s278] sm:$0xff]
      %v325 = vld [vmem:[%s278 + $0x8] sm:$0xff]
      %v326 = vld [vmem:[%s278 + $0x10] sm:$0xff]
      %v327 = vld [vmem:[%s278 + $0x18] sm:$0xff]
      %v328 = vld [vmem:[%s278 + $0x20] sm:$0xff]
      %v329 = vld [vmem:[%s278 + $0x28] sm:$0xff]
      %v330 = vld [vmem:[%s278 + $0x30] sm:$0xff]
      %v331 = vld [vmem:[%s278 + $0x38] sm:$0xff]
      %v332 = vpack.c.bf16 %v325, %v324
      %v333 = vpack.c.bf16 %v327, %v326
      %v334 = vpack.c.bf16 %v329, %v328
      %v335 = vpack.c.bf16 %v331, %v330
      %v341 = vunpack.c.l.b16 %v288
      %v342 = vunpack.c.l.b16 %v289
      %v343 = vunpack.c.l.b16 %v290
      %v344 = vunpack.c.l.b16 %v291
      %v345 = vunpack.c.l.b16 %v292
      %v346 = vpack.c.b16 %v342, %v341
      %v347 = vpack.c.b16 %v344, %v343
      %v348 = vpack.c.b16 %v345, %v345
      %vm349 = vcmask 523264
      %v351 = vsel %vm349, %v346, 0
      %v354 = vsel %vm349, %v347, 0
      %v357 = vsel %vm349, %v348, 0
      %359 = vmatprep.subr.bf16.mxu0 0
      %360 = vmatpush1.bf16.msra.mxu0 %v332
      %361 = vmatprep.subr.bf16.mxu0 0
      %362 = vmatpush1.bf16.msra.mxu0 %v333
      %363 = vmatprep.subr.bf16.mxu0 0
      %364 = vmatpush1.bf16.msra.mxu0 %v334
      %365 = vmatprep.subr.bf16.mxu0 0
      %366 = vmatpush1.bf16.msra.mxu0 %v335
      %367 = vmatprep.subr.bf16.mxu0 0
      %368 = vmatpush1.bf16.msra.mxu0 0
      %369 = vmatprep.subr.bf16.mxu0 0
      %370 = vmatpush1.bf16.msra.mxu0 0
      %371 = vmatprep.subr.bf16.mxu0 0
      %372 = vmatpush1.bf16.msra.mxu0 0
      %373 = vmatprep.subr.bf16.mxu0 0
      %374 = vmatpush1.bf16.msra.mxu0 0
      %375 = vmatprep.subr.bf16.mxu0 0
      %376 = vmatpush1.bf16.msra.mxu0 0
      %377 = vmatprep.subr.bf16.mxu0 0
      %378 = vmatpush1.bf16.msra.mxu0 0
      %379 = vmatprep.subr.bf16.mxu0 0
      %380 = vmatpush1.bf16.msra.mxu0 0
      %381 = vmatprep.subr.bf16.mxu0 0
      %382 = vmatpush1.bf16.msra.mxu0 0
      %383 = vmatprep.subr.bf16.mxu0 0
      %384 = vmatpush1.bf16.msra.mxu0 0
      %385 = vmatprep.subr.bf16.mxu0 0
      %386 = vmatpush1.bf16.msra.mxu0 0
      %387 = vmatprep.subr.bf16.mxu0 0
      %388 = vmatpush1.bf16.msra.mxu0 0
      %389 = vmatprep.subr.bf16.mxu0 0
      %390 = vmatpush1.bf16.msra.mxu0 0
      %391 = vmatprep.mubr.bf16.mxu0 0
      %392 = vmatmul.mubr.bf16.gmra.mrb[0].mxu0 %v351
      %v393 = vpop.f32.mrb[0].mxu0
      %v394 = vadd.f32 0.0, %v393
      %v395 = vpop.f32.mrb[0].mxu0
      %v396 = vpop.f32.mrb[0].mxu0
      %v397 = vadd.f32 0.0, %v396
      %v398 = vpop.f32.mrb[0].mxu0
      %399 = vmatprep.mubr.bf16.mxu0 0
      %400 = vmatmul.mubr.bf16.gmra.mrb[0].mxu0 %v354
      %v401 = vpop.f32.mrb[0].mxu0
      %v402 = vadd.f32 0.0, %v401
      %v403 = vpop.f32.mrb[0].mxu0
      %v404 = vpop.f32.mrb[0].mxu0
      %v405 = vadd.f32 0.0, %v404
      %v406 = vpop.f32.mrb[0].mxu0
      %407 = vmatprep.mubr.bf16.mxu0 0
      %408 = vmatmul.mubr.bf16.gmra.mrb[0].mxu0 %v357
      %v409 = vpop.f32.mrb[0].mxu0
      %v410 = vadd.f32 0.0, %v409
      %v411 = vpop.f32.mrb[0].mxu0
      %v412 = vpop.f32.mrb[0].mxu0
      %v413 = vpop.f32.mrb[0].mxu0
      %414 = vdwg.mxu0
      %v420 = vunpack.c.l.b16 %v293
      %v421 = vunpack.c.l.b16 %v294
      %v422 = vunpack.c.l.b16 %v295
      %v423 = vunpack.c.l.b16 %v296
      %v424 = vunpack.c.l.b16 %v297
      %v425 = vpack.c.b16 %v421, %v420
      %v426 = vpack.c.b16 %v423, %v422
      %v427 = vpack.c.b16 %v424, %v424
      %v429 = vsel %vm349, %v425, 0
      %v432 = vsel %vm349, %v426, 0
      %v435 = vsel %vm349, %v427, 0
      %437 = vmatprep.subr.bf16.mxu0 0
      %438 = vmatpush1.bf16.msra.mxu0 %v332
      %439 = vmatprep.subr.bf16.mxu0 0
      %440 = vmatpush1.bf16.msra.mxu0 %v333
      %441 = vmatprep.subr.bf16.mxu0 0
      %442 = vmatpush1.bf16.msra.mxu0 %v334
      %443 = vmatprep.subr.bf16.mxu0 0
      %444 = vmatpush1.bf16.msra.mxu0 %v335
      %445 = vmatprep.subr.bf16.mxu0 0
      %446 = vmatpush1.bf16.msra.mxu0 0
      %447 = vmatprep.subr.bf16.mxu0 0
      %448 = vmatpush1.bf16.msra.mxu0 0
      %449 = vmatprep.subr.bf16.mxu0 0
      %450 = vmatpush1.bf16.msra.mxu0 0
      %451 = vmatprep.subr.bf16.mxu0 0
      %452 = vmatpush1.bf16.msra.mxu0 0
      %453 = vmatprep.subr.bf16.mxu0 0
      %454 = vmatpush1.bf16.msra.mxu0 0
      %455 = vmatprep.subr.bf16.mxu0 0
      %456 = vmatpush1.bf16.msra.mxu0 0
      %457 = vmatprep.subr.bf16.mxu0 0
      %458 = vmatpush1.bf16.msra.mxu0 0
      %459 = vmatprep.subr.bf16.mxu0 0
      %460 = vmatpush1.bf16.msra.mxu0 0
      %461 = vmatprep.subr.bf16.mxu0 0
      %462 = vmatpush1.bf16.msra.mxu0 0
      %463 = vmatprep.subr.bf16.mxu0 0
      %464 = vmatpush1.bf16.msra.mxu0 0
      %465 = vmatprep.subr.bf16.mxu0 0
      %466 = vmatpush1.bf16.msra.mxu0 0
      %467 = vmatprep.subr.bf16.mxu0 0
      %468 = vmatpush1.bf16.msra.mxu0 0
      %469 = vmatprep.mubr.bf16.mxu0 0
      %470 = vmatmul.mubr.bf16.gmra.mrb[0].mxu0 %v429
      %v471 = vpop.f32.mrb[0].mxu0
      %v472 = vadd.f32 0.0, %v471
      %v473 = vpop.f32.mrb[0].mxu0
      %v474 = vpop.f32.mrb[0].mxu0
      %v475 = vadd.f32 0.0, %v474
      %v476 = vpop.f32.mrb[0].mxu0
      %477 = vmatprep.mubr.bf16.mxu0 0
      %478 = vmatmul.mubr.bf16.gmra.mrb[0].mxu0 %v432
      %v479 = vpop.f32.mrb[0].mxu0
      %v480 = vadd.f32 0.0, %v479
      %v481 = vpop.f32.mrb[0].mxu0
      %v482 = vpop.f32.mrb[0].mxu0
      %v483 = vadd.f32 0.0, %v482
      %v484 = vpop.f32.mrb[0].mxu0
      %485 = vmatprep.mubr.bf16.mxu0 0
      %486 = vmatmul.mubr.bf16.gmra.mrb[0].mxu0 %v435
      %v487 = vpop.f32.mrb[0].mxu0
      %v488 = vadd.f32 0.0, %v487
      %v489 = vpop.f32.mrb[0].mxu0
      %v490 = vpop.f32.mrb[0].mxu0
      %v491 = vpop.f32.mrb[0].mxu0
      %492 = vdwg.mxu0
      %v493 = vmul.f32 %v394, %v314
      %v494 = vmul.f32 %v397, %v315
      %v495 = vmul.f32 %v402, %v316
      %v496 = vmul.f32 %v405, %v317
      %v497 = vmul.f32 %v410, %v318
      %v498 = vmul.f32 %v472, %v319
      %v499 = vmul.f32 %v475, %v320
      %v500 = vmul.f32 %v480, %v321
      %v501 = vmul.f32 %v483, %v322
      %v502 = vmul.f32 %v488, %v323
      %v503 = vsub.f32 %v493, %v498
      %v504 = vsub.f32 %v494, %v499
      %v505 = vsub.f32 %v495, %v500
      %v506 = vsub.f32 %v496, %v501
      %v507 = vsub.f32 %v497, %v502
      %v508 = vpack.c.bf16 %v504, %v503
      %v509 = vpack.c.bf16 %v506, %v505
      %v510 = vpack.c.bf16 %v507, %v507
      %v511 = vmul.f32 %v394, %v319
      %v512 = vmul.f32 %v397, %v320
      %v513 = vmul.f32 %v402, %v321
      %v514 = vmul.f32 %v405, %v322
      %v515 = vmul.f32 %v410, %v323
      %v516 = vmul.f32 %v472, %v314
      %v517 = vmul.f32 %v475, %v315
      %v518 = vmul.f32 %v480, %v316
      %v519 = vmul.f32 %v483, %v317
      %v520 = vmul.f32 %v488, %v318
      %v521 = vadd.f32 %v511, %v516
      %v522 = vadd.f32 %v512, %v517
      %v523 = vadd.f32 %v513, %v518
      %v524 = vadd.f32 %v514, %v519
      %v525 = vadd.f32 %v515, %v520
      %v526 = vpack.c.bf16 %v522, %v521
      %v527 = vpack.c.bf16 %v524, %v523
      %v528 = vpack.c.bf16 %v525, %v525
      %v537 = vunpack.c.l.b16 %v298
      %v538 = vunpack.c.l.b16 %v299
      %v539 = vunpack.c.l.b16 %v300
      %v540 = vunpack.c.l.b16 %v301
      %v541 = vunpack.c.l.b16 %v302
      %v542 = vunpack.c.l.b16 %v303
      %v543 = vunpack.c.l.b16 %v304
      %v544 = vunpack.c.l.b16 %v305
      %v545 = vpack.c.b16 %v538, %v537
      %v546 = vpack.c.b16 %v540, %v539
      %v547 = vpack.c.b16 %v542, %v541
      %v548 = vpack.c.b16 %v544, %v543
      %vm549 = vcmask 326656
      %v551 = vsel %vm549, %v545, 0
      %v554 = vsel %vm549, %v546, 0
      %v557 = vsel %vm549, %v547, 0
      %v560 = vsel %vm549, %v548, 0
      %vm562 = vcmask 1043456
      %v564 = vsel %vm562, %v510, 0
      %566 = vmatprep.subr.bf16.mxu0 0
      %567 = vmatpush1.bf16.msra.mxu0 %v508
      %568 = vmatprep.subr.bf16.mxu0 0
      %569 = vmatpush1.bf16.msra.mxu0 %v509
      %570 = vmatprep.subr.bf16.mxu0 0
      %571 = vmatpush1.bf16.msra.mxu0 %v564
      %572 = vmatprep.subr.bf16.mxu0 0
      %573 = vmatpush1.bf16.msra.mxu0 0
      %574 = vmatprep.subr.bf16.mxu0 0
      %575 = vmatpush1.bf16.msra.mxu0 0
      %576 = vmatprep.subr.bf16.mxu0 0
      %577 = vmatpush1.bf16.msra.mxu0 0
      %578 = vmatprep.subr.bf16.mxu0 0
      %579 = vmatpush1.bf16.msra.mxu0 0
      %580 = vmatprep.subr.bf16.mxu0 0
      %581 = vmatpush1.bf16.msra.mxu0 0
      %582 = vmatprep.subr.bf16.mxu0 0
      %583 = vmatpush1.bf16.msra.mxu0 0
      %584 = vmatprep.subr.bf16.mxu0 0
      %585 = vmatpush1.bf16.msra.mxu0 0
      %586 = vmatprep.subr.bf16.mxu0 0
      %587 = vmatpush1.bf16.msra.mxu0 0
      %588 = vmatprep.subr.bf16.mxu0 0
      %589 = vmatpush1.bf16.msra.mxu0 0
      %590 = vmatprep.subr.bf16.mxu0 0
      %591 = vmatpush1.bf16.msra.mxu0 0
      %592 = vmatprep.subr.bf16.mxu0 0
      %593 = vmatpush1.bf16.msra.mxu0 0
      %594 = vmatprep.subr.bf16.mxu0 0
      %595 = vmatpush1.bf16.msra.mxu0 0
      %596 = vmatprep.subr.bf16.mxu0 0
      %597 = vmatpush1.bf16.msra.mxu0 0
      %598 = vmatprep.mubr.bf16.mxu0 0
      %599 = vmatmul.mubr.bf16.gmra.mrb[0].mxu0 %v551
      %v600 = vpop.f32.mrb[0].mxu0
      %v601 = vadd.f32 0.0, %v600
      %v602 = vpop.f32.mrb[0].mxu0
      %v603 = vpop.f32.mrb[0].mxu0
      %v604 = vadd.f32 0.0, %v603
      %v605 = vpop.f32.mrb[0].mxu0
      %606 = vmatprep.mubr.bf16.mxu0 0
      %607 = vmatmul.mubr.bf16.gmra.mrb[0].mxu0 %v554
      %v608 = vpop.f32.mrb[0].mxu0
      %v609 = vadd.f32 0.0, %v608
      %v610 = vpop.f32.mrb[0].mxu0
      %v611 = vpop.f32.mrb[0].mxu0
      %v612 = vadd.f32 0.0, %v611
      %v613 = vpop.f32.mrb[0].mxu0
      %614 = vmatprep.mubr.bf16.mxu0 0
      %615 = vmatmul.mubr.bf16.gmra.mrb[0].mxu0 %v557
      %v616 = vpop.f32.mrb[0].mxu0
      %v617 = vadd.f32 0.0, %v616
      %v618 = vpop.f32.mrb[0].mxu0
      %v619 = vpop.f32.mrb[0].mxu0
      %v620 = vadd.f32 0.0, %v619
      %v621 = vpop.f32.mrb[0].mxu0
      %622 = vmatprep.mubr.bf16.mxu0 0
      %623 = vmatmul.mubr.bf16.gmra.mrb[0].mxu0 %v560
      %v624 = vpop.f32.mrb[0].mxu0
      %v625 = vadd.f32 0.0, %v624
      %v626 = vpop.f32.mrb[0].mxu0
      %v627 = vpop.f32.mrb[0].mxu0
      %v628 = vadd.f32 0.0, %v627
      %v629 = vpop.f32.mrb[0].mxu0
      %630 = vdwg.mxu0
      %v639 = vunpack.c.l.b16 %v306
      %v640 = vunpack.c.l.b16 %v307
      %v641 = vunpack.c.l.b16 %v308
      %v642 = vunpack.c.l.b16 %v309
      %v643 = vunpack.c.l.b16 %v310
      %v644 = vunpack.c.l.b16 %v311
      %v645 = vunpack.c.l.b16 %v312
      %v646 = vunpack.c.l.b16 %v313
      %v647 = vpack.c.b16 %v640, %v639
      %v648 = vpack.c.b16 %v642, %v641
      %v649 = vpack.c.b16 %v644, %v643
      %v650 = vpack.c.b16 %v646, %v645
      %v652 = vsel %vm549, %v647, 0
      %v655 = vsel %vm549, %v648, 0
      %v658 = vsel %vm549, %v649, 0
      %v661 = vsel %vm549, %v650, 0
      %v664 = vsel %vm562, %v528, 0
      %666 = vmatprep.subr.bf16.mxu0 0
      %667 = vmatpush1.bf16.msra.mxu0 %v526
      %668 = vmatprep.subr.bf16.mxu0 0
      %669 = vmatpush1.bf16.msra.mxu0 %v527
      %670 = vmatprep.subr.bf16.mxu0 0
      %671 = vmatpush1.bf16.msra.mxu0 %v664
      %672 = vmatprep.subr.bf16.mxu0 0
      %673 = vmatpush1.bf16.msra.mxu0 0
      %674 = vmatprep.subr.bf16.mxu0 0
      %675 = vmatpush1.bf16.msra.mxu0 0
      %676 = vmatprep.subr.bf16.mxu0 0
      %677 = vmatpush1.bf16.msra.mxu0 0
      %678 = vmatprep.subr.bf16.mxu0 0
      %679 = vmatpush1.bf16.msra.mxu0 0
      %680 = vmatprep.subr.bf16.mxu0 0
      %681 = vmatpush1.bf16.msra.mxu0 0
      %682 = vmatprep.subr.bf16.mxu0 0
      %683 = vmatpush1.bf16.msra.mxu0 0
      %684 = vmatprep.subr.bf16.mxu0 0
      %685 = vmatpush1.bf16.msra.mxu0 0
      %686 = vmatprep.subr.bf16.mxu0 0
      %687 = vmatpush1.bf16.msra.mxu0 0
      %688 = vmatprep.subr.bf16.mxu0 0
      %689 = vmatpush1.bf16.msra.mxu0 0
      %690 = vmatprep.subr.bf16.mxu0 0
      %691 = vmatpush1.bf16.msra.mxu0 0
      %692 = vmatprep.subr.bf16.mxu0 0
      %693 = vmatpush1.bf16.msra.mxu0 0
      %694 = vmatprep.subr.bf16.mxu0 0
      %695 = vmatpush1.bf16.msra.mxu0 0
      %696 = vmatprep.subr.bf16.mxu0 0
      %697 = vmatpush1.bf16.msra.mxu0 0
      %698 = vmatprep.mubr.bf16.mxu0 0
      %699 = vmatmul.mubr.bf16.gmra.mrb[0].mxu0 %v652
      %v700 = vpop.f32.mrb[0].mxu0
      %v701 = vadd.f32 0.0, %v700
      %v702 = vpop.f32.mrb[0].mxu0
      %v703 = vpop.f32.mrb[0].mxu0
      %v704 = vadd.f32 0.0, %v703
      %v705 = vpop.f32.mrb[0].mxu0
      %706 = vmatprep.mubr.bf16.mxu0 0
      %707 = vmatmul.mubr.bf16.gmra.mrb[0].mxu0 %v655
      %v708 = vpop.f32.mrb[0].mxu0
      %v709 = vadd.f32 0.0, %v708
      %v710 = vpop.f32.mrb[0].mxu0
      %v711 = vpop.f32.mrb[0].mxu0
      %v712 = vadd.f32 0.0, %v711
      %v713 = vpop.f32.mrb[0].mxu0
      %714 = vmatprep.mubr.bf16.mxu0 0
      %715 = vmatmul.mubr.bf16.gmra.mrb[0].mxu0 %v658
      %v716 = vpop.f32.mrb[0].mxu0
      %v717 = vadd.f32 0.0, %v716
      %v718 = vpop.f32.mrb[0].mxu0
      %v719 = vpop.f32.mrb[0].mxu0
      %v720 = vadd.f32 0.0, %v719
      %v721 = vpop.f32.mrb[0].mxu0
      %722 = vmatprep.mubr.bf16.mxu0 0
      %723 = vmatmul.mubr.bf16.gmra.mrb[0].mxu0 %v661
      %v724 = vpop.f32.mrb[0].mxu0
      %v725 = vadd.f32 0.0, %v724
      %v726 = vpop.f32.mrb[0].mxu0
      %v727 = vpop.f32.mrb[0].mxu0
      %v728 = vadd.f32 0.0, %v727
      %v729 = vpop.f32.mrb[0].mxu0
      %730 = vdwg.mxu0
      %v731 = vsub.f32 %v601, %v701
      %v732 = vsub.f32 %v604, %v704
      %v733 = vsub.f32 %v609, %v709
      %v734 = vsub.f32 %v612, %v712
      %v735 = vsub.f32 %v617, %v717
      %v736 = vsub.f32 %v620, %v720
      %v737 = vsub.f32 %v625, %v725
      %v738 = vsub.f32 %v628, %v728
      %vm739 = vcmask 31744
      %740 = vst.msk [vmem:[%s285] sm:$0xff] %vm739, %v731
      %741 = vst.msk [vmem:[%s285 + $0x8] sm:$0xff] %vm739, %v732
      %742 = vst.msk [vmem:[%s285 + $0x10] sm:$0xff] %vm739, %v733
      %743 = vst.msk [vmem:[%s285 + $0x18] sm:$0xff] %vm739, %v734
      %744 = vst.msk [vmem:[%s285 + $0x20] sm:$0xff] %vm739, %v735
      %745 = vst.msk [vmem:[%s285 + $0x28] sm:$0xff] %vm739, %v736
      %746 = vst.msk [vmem:[%s285 + $0x30] sm:$0xff] %vm739, %v737
      %747 = vst.msk [vmem:[%s285 + $0x38] sm:$0xff] %vm739, %v738
      %s748 = scalar_lea.vmem %s278, 64
      %v749 = vld [vmem:[%s748] sm:$0xff]
      %v750 = vld [vmem:[%s748 + $0x8] sm:$0xff]
      %v751 = vld [vmem:[%s748 + $0x10] sm:$0xff]
      %v752 = vld [vmem:[%s748 + $0x18] sm:$0xff]
      %v753 = vld [vmem:[%s748 + $0x20] sm:$0xff]
      %v754 = vld [vmem:[%s748 + $0x28] sm:$0xff]
      %v755 = vld [vmem:[%s748 + $0x30] sm:$0xff]
      %v756 = vld [vmem:[%s748 + $0x38] sm:$0xff]
      %v757 = vpack.c.bf16 %v750, %v749
      %v758 = vpack.c.bf16 %v752, %v751
      %v759 = vpack.c.bf16 %v754, %v753
      %v760 = vpack.c.bf16 %v756, %v755
      %761 = vmatprep.subr.bf16.mxu0 0
      %762 = vmatpush1.bf16.msra.mxu0 %v757
      %763 = vmatprep.subr.bf16.mxu0 0
      %764 = vmatpush1.bf16.msra.mxu0 %v758
      %765 = vmatprep.subr.bf16.mxu0 0
      %766 = vmatpush1.bf16.msra.mxu0 %v759
      %767 = vmatprep.subr.bf16.mxu0 0
      %768 = vmatpush1.bf16.msra.mxu0 %v760
      %769 = vmatprep.subr.bf16.mxu0 0
      %770 = vmatpush1.bf16.msra.mxu0 0
      %771 = vmatprep.subr.bf16.mxu0 0
      %772 = vmatpush1.bf16.msra.mxu0 0
      %773 = vmatprep.subr.bf16.mxu0 0
      %774 = vmatpush1.bf16.msra.mxu0 0
      %775 = vmatprep.subr.bf16.mxu0 0
      %776 = vmatpush1.bf16.msra.mxu0 0
      %777 = vmatprep.subr.bf16.mxu0 0
      %778 = vmatpush1.bf16.msra.mxu0 0
      %779 = vmatprep.subr.bf16.mxu0 0
      %780 = vmatpush1.bf16.msra.mxu0 0
      %781 = vmatprep.subr.bf16.mxu0 0
      %782 = vmatpush1.bf16.msra.mxu0 0
      %783 = vmatprep.subr.bf16.mxu0 0
      %784 = vmatpush1.bf16.msra.mxu0 0
      %785 = vmatprep.subr.bf16.mxu0 0
      %786 = vmatpush1.bf16.msra.mxu0 0
      %787 = vmatprep.subr.bf16.mxu0 0
      %788 = vmatpush1.bf16.msra.mxu0 0
      %789 = vmatprep.subr.bf16.mxu0 0
      %790 = vmatpush1.bf16.msra.mxu0 0
      %791 = vmatprep.subr.bf16.mxu0 0
      %792 = vmatpush1.bf16.msra.mxu0 0
      %793 = vmatprep.mubr.bf16.mxu0 0
      %794 = vmatmul.mubr.bf16.gmra.mrb[0].mxu0 %v351
      %v795 = vpop.f32.mrb[0].mxu0
      %v796 = vadd.f32 0.0, %v795
      %v797 = vpop.f32.mrb[0].mxu0
      %v798 = vpop.f32.mrb[0].mxu0
      %v799 = vadd.f32 0.0, %v798
      %v800 = vpop.f32.mrb[0].mxu0
      %801 = vmatprep.mubr.bf16.mxu0 0
      %802 = vmatmul.mubr.bf16.gmra.mrb[0].mxu0 %v354
      %v803 = vpop.f32.mrb[0].mxu0
      %v804 = vadd.f32 0.0, %v803
      %v805 = vpop.f32.mrb[0].mxu0
      %v806 = vpop.f32.mrb[0].mxu0
      %v807 = vadd.f32 0.0, %v806
      %v808 = vpop.f32.mrb[0].mxu0
      %809 = vmatprep.mubr.bf16.mxu0 0
      %810 = vmatmul.mubr.bf16.gmra.mrb[0].mxu0 %v357
      %v811 = vpop.f32.mrb[0].mxu0
      %v812 = vadd.f32 0.0, %v811
      %v813 = vpop.f32.mrb[0].mxu0
      %v814 = vpop.f32.mrb[0].mxu0
      %v815 = vpop.f32.mrb[0].mxu0
      %816 = vdwg.mxu0
      %817 = vmatprep.subr.bf16.mxu0 0
      %818 = vmatpush1.bf16.msra.mxu0 %v757
      %819 = vmatprep.subr.bf16.mxu0 0
      %820 = vmatpush1.bf16.msra.mxu0 %v758
      %821 = vmatprep.subr.bf16.mxu0 0
      %822 = vmatpush1.bf16.msra.mxu0 %v759
      %823 = vmatprep.subr.bf16.mxu0 0
      %824 = vmatpush1.bf16.msra.mxu0 %v760
      %825 = vmatprep.subr.bf16.mxu0 0
      %826 = vmatpush1.bf16.msra.mxu0 0
      %827 = vmatprep.subr.bf16.mxu0 0
      %828 = vmatpush1.bf16.msra.mxu0 0
      %829 = vmatprep.subr.bf16.mxu0 0
      %830 = vmatpush1.bf16.msra.mxu0 0
      %831 = vmatprep.subr.bf16.mxu0 0
      %832 = vmatpush1.bf16.msra.mxu0 0
      %833 = vmatprep.subr.bf16.mxu0 0
      %834 = vmatpush1.bf16.msra.mxu0 0
      %835 = vmatprep.subr.bf16.mxu0 0
      %836 = vmatpush1.bf16.msra.mxu0 0
      %837 = vmatprep.subr.bf16.mxu0 0
      %838 = vmatpush1.bf16.msra.mxu0 0
      %839 = vmatprep.subr.bf16.mxu0 0
      %840 = vmatpush1.bf16.msra.mxu0 0
      %841 = vmatprep.subr.bf16.mxu0 0
      %842 = vmatpush1.bf16.msra.mxu0 0
      %843 = vmatprep.subr.bf16.mxu0 0
      %844 = vmatpush1.bf16.msra.mxu0 0
      %845 = vmatprep.subr.bf16.mxu0 0
      %846 = vmatpush1.bf16.msra.mxu0 0
      %847 = vmatprep.subr.bf16.mxu0 0
      %848 = vmatpush1.bf16.msra.mxu0 0
      %849 = vmatprep.mubr.bf16.mxu0 0
      %850 = vmatmul.mubr.bf16.gmra.mrb[0].mxu0 %v429
      %v851 = vpop.f32.mrb[0].mxu0
      %v852 = vadd.f32 0.0, %v851
      %v853 = vpop.f32.mrb[0].mxu0
      %v854 = vpop.f32.mrb[0].mxu0
      %v855 = vadd.f32 0.0, %v854
      %v856 = vpop.f32.mrb[0].mxu0
      %857 = vmatprep.mubr.bf16.mxu0 0
      %858 = vmatmul.mubr.bf16.gmra.mrb[0].mxu0 %v432
      %v859 = vpop.f32.mrb[0].mxu0
      %v860 = vadd.f32 0.0, %v859
      %v861 = vpop.f32.mrb[0].mxu0
      %v862 = vpop.f32.mrb[0].mxu0
      %v863 = vadd.f32 0.0, %v862
      %v864 = vpop.f32.mrb[0].mxu0
      %865 = vmatprep.mubr.bf16.mxu0 0
      %866 = vmatmul.mubr.bf16.gmra.mrb[0].mxu0 %v435
      %v867 = vpop.f32.mrb[0].mxu0
      %v868 = vadd.f32 0.0, %v867
      %v869 = vpop.f32.mrb[0].mxu0
      %v870 = vpop.f32.mrb[0].mxu0
      %v871 = vpop.f32.mrb[0].mxu0
      %872 = vdwg.mxu0
      %v873 = vmul.f32 %v796, %v314
      %v874 = vmul.f32 %v799, %v315
      %v875 = vmul.f32 %v804, %v316
      %v876 = vmul.f32 %v807, %v317
      %v877 = vmul.f32 %v812, %v318
      %v878 = vmul.f32 %v852, %v319
      %v879 = vmul.f32 %v855, %v320
      %v880 = vmul.f32 %v860, %v321
      %v881 = vmul.f32 %v863, %v322
      %v882 = vmul.f32 %v868, %v323
      %v883 = vsub.f32 %v873, %v878
      %v884 = vsub.f32 %v874, %v879
      %v885 = vsub.f32 %v875, %v880
      %v886 = vsub.f32 %v876, %v881
      %v887 = vsub.f32 %v877, %v882
      %v888 = vpack.c.bf16 %v884, %v883
      %v889 = vpack.c.bf16 %v886, %v885
      %v890 = vpack.c.bf16 %v887, %v887
      %v891 = vmul.f32 %v796, %v319
      %v892 = vmul.f32 %v799, %v320
      %v893 = vmul.f32 %v804, %v321
      %v894 = vmul.f32 %v807, %v322
      %v895 = vmul.f32 %v812, %v323
      %v896 = vmul.f32 %v852, %v314
      %v897 = vmul.f32 %v855, %v315
      %v898 = vmul.f32 %v860, %v316
      %v899 = vmul.f32 %v863, %v317
      %v900 = vmul.f32 %v868, %v318
      %v901 = vadd.f32 %v891, %v896
      %v902 = vadd.f32 %v892, %v897
      %v903 = vadd.f32 %v893, %v898
      %v904 = vadd.f32 %v894, %v899
      %v905 = vadd.f32 %v895, %v900
      %v906 = vpack.c.bf16 %v902, %v901
      %v907 = vpack.c.bf16 %v904, %v903
      %v908 = vpack.c.bf16 %v905, %v905
      %v910 = vsel %vm562, %v890, 0
      %912 = vmatprep.subr.bf16.mxu0 0
      %913 = vmatpush1.bf16.msra.mxu0 %v888
      %914 = vmatprep.subr.bf16.mxu0 0
      %915 = vmatpush1.bf16.msra.mxu0 %v889
      %916 = vmatprep.subr.bf16.mxu0 0
      %917 = vmatpush1.bf16.msra.mxu0 %v910
      %918 = vmatprep.subr.bf16.mxu0 0
      %919 = vmatpush1.bf16.msra.mxu0 0
      %920 = vmatprep.subr.bf16.mxu0 0
      %921 = vmatpush1.bf16.msra.mxu0 0
      %922 = vmatprep.subr.bf16.mxu0 0
      %923 = vmatpush1.bf16.msra.mxu0 0
      %924 = vmatprep.subr.bf16.mxu0 0
      %925 = vmatpush1.bf16.msra.mxu0 0
      %926 = vmatprep.subr.bf16.mxu0 0
      %927 = vmatpush1.bf16.msra.mxu0 0
      %928 = vmatprep.subr.bf16.mxu0 0
      %929 = vmatpush1.bf16.msra.mxu0 0
      %930 = vmatprep.subr.bf16.mxu0 0
      %931 = vmatpush1.bf16.msra.mxu0 0
      %932 = vmatprep.subr.bf16.mxu0 0
      %933 = vmatpush1.bf16.msra.mxu0 0
      %934 = vmatprep.subr.bf16.mxu0 0
      %935 = vmatpush1.bf16.msra.mxu0 0
      %936 = vmatprep.subr.bf16.mxu0 0
      %937 = vmatpush1.bf16.msra.mxu0 0
      %938 = vmatprep.subr.bf16.mxu0 0
      %939 = vmatpush1.bf16.msra.mxu0 0
      %940 = vmatprep.subr.bf16.mxu0 0
      %941 = vmatpush1.bf16.msra.mxu0 0
      %942 = vmatprep.subr.bf16.mxu0 0
      %943 = vmatpush1.bf16.msra.mxu0 0
      %944 = vmatprep.mubr.bf16.mxu0 0
      %945 = vmatmul.mubr.bf16.gmra.mrb[0].mxu0 %v551
      %v946 = vpop.f32.mrb[0].mxu0
      %v947 = vadd.f32 0.0, %v946
      %v948 = vpop.f32.mrb[0].mxu0
      %v949 = vpop.f32.mrb[0].mxu0
      %v950 = vadd.f32 0.0, %v949
      %v951 = vpop.f32.mrb[0].mxu0
      %952 = vmatprep.mubr.bf16.mxu0 0
      %953 = vmatmul.mubr.bf16.gmra.mrb[0].mxu0 %v554
      %v954 = vpop.f32.mrb[0].mxu0
      %v955 = vadd.f32 0.0, %v954
      %v956 = vpop.f32.mrb[0].mxu0
      %v957 = vpop.f32.mrb[0].mxu0
      %v958 = vadd.f32 0.0, %v957
      %v959 = vpop.f32.mrb[0].mxu0
      %960 = vmatprep.mubr.bf16.mxu0 0
      %961 = vmatmul.mubr.bf16.gmra.mrb[0].mxu0 %v557
      %v962 = vpop.f32.mrb[0].mxu0
      %v963 = vadd.f32 0.0, %v962
      %v964 = vpop.f32.mrb[0].mxu0
      %v965 = vpop.f32.mrb[0].mxu0
      %v966 = vadd.f32 0.0, %v965
      %v967 = vpop.f32.mrb[0].mxu0
      %968 = vmatprep.mubr.bf16.mxu0 0
      %969 = vmatmul.mubr.bf16.gmra.mrb[0].mxu0 %v560
      %v970 = vpop.f32.mrb[0].mxu0
      %v971 = vadd.f32 0.0, %v970
      %v972 = vpop.f32.mrb[0].mxu0
      %v973 = vpop.f32.mrb[0].mxu0
      %v974 = vadd.f32 0.0, %v973
      %v975 = vpop.f32.mrb[0].mxu0
      %976 = vdwg.mxu0
      %v978 = vsel %vm562, %v908, 0
      %980 = vmatprep.subr.bf16.mxu0 0
      %981 = vmatpush1.bf16.msra.mxu0 %v906
      %982 = vmatprep.subr.bf16.mxu0 0
      %983 = vmatpush1.bf16.msra.mxu0 %v907
      %984 = vmatprep.subr.bf16.mxu0 0
      %985 = vmatpush1.bf16.msra.mxu0 %v978
      %986 = vmatprep.subr.bf16.mxu0 0
      %987 = vmatpush1.bf16.msra.mxu0 0
      %988 = vmatprep.subr.bf16.mxu0 0
      %989 = vmatpush1.bf16.msra.mxu0 0
      %990 = vmatprep.subr.bf16.mxu0 0
      %991 = vmatpush1.bf16.msra.mxu0 0
      %992 = vmatprep.subr.bf16.mxu0 0
      %993 = vmatpush1.bf16.msra.mxu0 0
      %994 = vmatprep.subr.bf16.mxu0 0
      %995 = vmatpush1.bf16.msra.mxu0 0
      %996 = vmatprep.subr.bf16.mxu0 0
      %997 = vmatpush1.bf16.msra.mxu0 0
      %998 = vmatprep.subr.bf16.mxu0 0
      %999 = vmatpush1.bf16.msra.mxu0 0
      %1000 = vmatprep.subr.bf16.mxu0 0
      %1001 = vmatpush1.bf16.msra.mxu0 0
      %1002 = vmatprep.subr.bf16.mxu0 0
      %1003 = vmatpush1.bf16.msra.mxu0 0
      %1004 = vmatprep.subr.bf16.mxu0 0
      %1005 = vmatpush1.bf16.msra.mxu0 0
      %1006 = vmatprep.subr.bf16.mxu0 0
      %1007 = vmatpush1.bf16.msra.mxu0 0
      %1008 = vmatprep.subr.bf16.mxu0 0
      %1009 = vmatpush1.bf16.msra.mxu0 0
      %1010 = vmatprep.subr.bf16.mxu0 0
      %1011 = vmatpush1.bf16.msra.mxu0 0
      %1012 = vmatprep.mubr.bf16.mxu0 0
      %1013 = vmatmul.mubr.bf16.gmra.mrb[0].mxu0 %v652
      %v1014 = vpop.f32.mrb[0].mxu0
      %v1015 = vadd.f32 0.0, %v1014
      %v1016 = vpop.f32.mrb[0].mxu0
      %v1017 = vpop.f32.mrb[0].mxu0
      %v1018 = vadd.f32 0.0, %v1017
      %v1019 = vpop.f32.mrb[0].mxu0
      %1020 = vmatprep.mubr.bf16.mxu0 0
      %1021 = vmatmul.mubr.bf16.gmra.mrb[0].mxu0 %v655
      %v1022 = vpop.f32.mrb[0].mxu0
      %v1023 = vadd.f32 0.0, %v1022
      %v1024 = vpop.f32.mrb[0].mxu0
      %v1025 = vpop.f32.mrb[0].mxu0
      %v1026 = vadd.f32 0.0, %v1025
      %v1027 = vpop.f32.mrb[0].mxu0
      %1028 = vmatprep.mubr.bf16.mxu0 0
      %1029 = vmatmul.mubr.bf16.gmra.mrb[0].mxu0 %v658
      %v1030 = vpop.f32.mrb[0].mxu0
      %v1031 = vadd.f32 0.0, %v1030
      %v1032 = vpop.f32.mrb[0].mxu0
      %v1033 = vpop.f32.mrb[0].mxu0
      %v1034 = vadd.f32 0.0, %v1033
      %v1035 = vpop.f32.mrb[0].mxu0
      %1036 = vmatprep.mubr.bf16.mxu0 0
      %1037 = vmatmul.mubr.bf16.gmra.mrb[0].mxu0 %v661
      %v1038 = vpop.f32.mrb[0].mxu0
      %v1039 = vadd.f32 0.0, %v1038
      %v1040 = vpop.f32.mrb[0].mxu0
      %v1041 = vpop.f32.mrb[0].mxu0
      %v1042 = vadd.f32 0.0, %v1041
      %v1043 = vpop.f32.mrb[0].mxu0
      %1044 = vdwg.mxu0
      %v1045 = vsub.f32 %v947, %v1015
      %v1046 = vsub.f32 %v950, %v1018
      %v1047 = vsub.f32 %v955, %v1023
      %v1048 = vsub.f32 %v958, %v1026
      %v1049 = vsub.f32 %v963, %v1031
      %v1050 = vsub.f32 %v966, %v1034
      %v1051 = vsub.f32 %v971, %v1039
      %v1052 = vsub.f32 %v974, %v1042
      %s1053 = scalar_lea.vmem %s285, 64
      %1054 = vst.msk [vmem:[%s1053] sm:$0xff] %vm739, %v1045
      %1055 = vst.msk [vmem:[%s1053 + $0x8] sm:$0xff] %vm739, %v1046
      %1056 = vst.msk [vmem:[%s1053 + $0x10] sm:$0xff] %vm739, %v1047
      %1057 = vst.msk [vmem:[%s1053 + $0x18] sm:$0xff] %vm739, %v1048
      %1058 = vst.msk [vmem:[%s1053 + $0x20] sm:$0xff] %vm739, %v1049
      %1059 = vst.msk [vmem:[%s1053 + $0x28] sm:$0xff] %vm739, %v1050
      %1060 = vst.msk [vmem:[%s1053 + $0x30] sm:$0xff] %vm739, %v1051
      %1061 = vst.msk [vmem:[%s1053 + $0x38] sm:$0xff] %vm739, %v1052
      %s1062 = smul.u32 2, %s18
      %p1063 = scmp.lt.s32.totalorder %s1062, 3
      %s1064 = scalar_select %p1063, %s1062, 3
      %s1065 = smul.addr %s1064, 8
      %s1066 = smul.addr %s1065, 8
      %s1067 = scalar_lea.vmem %s7, %s1066
      // Predicated region
      $region49: #{tpu_custom_call.1} parent=47 // pred_check
        %p1068 = pneg %p188
      $region50: #{tpu_custom_call.1} parent=47 // pred_check_branch
        %1070 = sbr.rel (%p1068) target = $region52
      $region51: #{tpu_custom_call.1} parent=47 // pred_region
        %s1071 = smul.u32 2, %s18
      $region52: #{tpu_custom_call.1} parent=47 // pred_fallthru
        _
    $region48: #{tpu_custom_call.1} parent=5 // pred_fallthru
      _
    %p1072 = scmp.le.s32.totalorder 2, %s13
    // Predicated region
    $region53: #{tpu_custom_call.1} parent=5 // pred_check
      %p1073 = pneg %p1072
    $region54: #{tpu_custom_call.1} parent=5 // pred_check_branch
      %1075 = sbr.rel (%p1073) target = $region56
    $region55: #{tpu_custom_call.1} parent=5 // pred_region
      %s1076 = ssub.s32 %s13, 2
      // Predicated region
      $region57: #{tpu_custom_call.1} parent=55 // pred_check
        %p1077 = pneg %p194
      $region58: #{tpu_custom_call.1} parent=55 // pred_check_branch
        %1079 = sbr.rel (%p1077) target = $region60
      $region59: #{tpu_custom_call.1} parent=55 // pred_region
        %s1080 = smul.u32 2, %s19
        %p1081 = scmp.lt.s32.totalorder %s1080, 3
        %s1082 = scalar_select %p1081, %s1080, 3
        %s1083 = smul.addr %s1082, 8
        %s1084 = smul.addr %s1083, 8
        %s1085 = scalar_lea.vmem %s7, %s1084
      $region60: #{tpu_custom_call.1} parent=55 // pred_fallthru
        _
    $region56: #{tpu_custom_call.1} parent=5 // pred_fallthru
      _
  $region6: #{tpu_custom_call.1} parent=0 // loop_footer
    %s17 = sadd.s32 1, %s13
  $region7: #{tpu_custom_call.1} parent=0 // loop_footer_branch
    %12 = sbr.rel target = $region3
  $region8: #{tpu_custom_call.1} parent=0 // loop_exit
    _

</llo_original>
